<compile_context>
chip_gen: v7x
topology: tpu7x:2x2x1
jax: 0.10.0
libtpu: 0.0.40
codegen_flags: <defaults>
</compile_context>

<pallas_src>
import jax
import jax.numpy as jnp
from jax.experimental import pallas as pl
from jax.experimental.pallas import tpu as pltpu


TM_MAX = 512  # max rows (N*Ho*Wo) per grid step; biggest tile that is still cheap in VMEM


def _round_up(x, m):
    return ((x + m - 1) // m) * m


# ----------------------------------------------------------------------------
# Pallas kernels
# ----------------------------------------------------------------------------
def _conv_bn_relu_kernel(p_ref, w_ref, s_ref, b_ref, o_ref):
    """relu((patches @ W) * scale + bias); bf16 operands, f32 accumulate/epilogue."""
    acc = jnp.dot(p_ref[...], w_ref[...], preferred_element_type=jnp.float32)
    y = acc * s_ref[...] + b_ref[...]
    o_ref[...] = jnp.maximum(y, 0.0).astype(o_ref.dtype)


def _stem_head_kernel(p_ref, w0_ref, s0_ref, b0_ref, w1_ref, s1_ref, b1_ref,
                      feat_ref, left_ref):
    """First 3x3 s2 ConvBNReLU with the 1x1 ConvBNReLU ('left[0]') fused as epilogue.

    Both outputs share the same M rows, so the 1x1 conv is just a second small
    matmul on the still-VMEM-resident feat tile.
    """
    acc0 = jnp.dot(p_ref[...], w0_ref[...], preferred_element_type=jnp.float32)
    feat = jnp.maximum(acc0 * s0_ref[...] + b0_ref[...], 0.0)
    feat_ref[...] = feat.astype(feat_ref.dtype)
    acc1 = jnp.dot(feat.astype(w1_ref.dtype), w1_ref[...],
                   preferred_element_type=jnp.float32)
    left = acc1 * s1_ref[...] + b1_ref[...]
    left_ref[...] = jnp.maximum(left, 0.0).astype(left_ref.dtype)


# ----------------------------------------------------------------------------
# Wrapper glue (padding / im2col / reshapes; compute stays in the kernels)
# ----------------------------------------------------------------------------
def _im2col(x_nhwc, ks, stride, padding):
    N, H, W, C = x_nhwc.shape
    Ho = (H + 2 * padding - ks) // stride + 1
    Wo = (W + 2 * padding - ks) // stride + 1
    xp = jnp.pad(x_nhwc, ((0, 0), (padding, padding), (padding, padding), (0, 0)))
    cols = []
    for kh in range(ks):
        for kw in range(ks):
            cols.append(
                xp[:, kh:kh + stride * (Ho - 1) + 1:stride,
                      kw:kw + stride * (Wo - 1) + 1:stride, :]
            )
    patches = jnp.concatenate(cols, axis=-1)                 # (N, Ho, Wo, ks*ks*C)
    return patches.reshape(N * Ho * Wo, ks * ks * C), (N, Ho, Wo)


def _prep_operands(patches, weight):
    """Pad M to a tile multiple, pad K to 8-aligned, cast to bf16; reshape weight."""
    Cout = weight.shape[0]
    M, K = patches.shape
    Kp = _round_up(K, 8)                     # e.g. first conv K=27 -> 32
    tm = min(TM_MAX, _round_up(M, 16))       # bf16 sublane-friendly tile
    Mp = _round_up(M, tm)
    p = jnp.pad(patches, ((0, Mp - M), (0, Kp - K))).astype(jnp.bfloat16)
    # (Cout, Cin, kh, kw) -> (kh, kw, Cin, Cout) -> (K, Cout), matches im2col order.
    w2 = jnp.transpose(weight, (2, 3, 1, 0)).reshape(K, Cout)
    w2 = jnp.pad(w2, ((0, Kp - K), (0, 0))).astype(jnp.bfloat16)
    return p, w2, tm, Mp, M, Kp, Cout


def conv_bn_relu(x_nhwc, weight, bn_scale, bn_bias, *, ks, stride, padding,
                 out_dtype=jnp.bfloat16):
    """ConvBNReLU (conv no-bias + folded BN + ReLU), tiled over M rows."""
    patches, (N, Ho, Wo) = _im2col(x_nhwc.astype(jnp.bfloat16), ks, stride, padding)
    p, w2, tm, Mp, M, Kp, Cout = _prep_operands(patches, weight)
    s2 = bn_scale.reshape(1, Cout).astype(jnp.float32)
    b2 = bn_bias.reshape(1, Cout).astype(jnp.float32)

    out = pl.pallas_call(
        _conv_bn_relu_kernel,
        out_shape=jax.ShapeDtypeStruct((Mp, Cout), out_dtype),
        grid=(Mp // tm,),
        in_specs=[
            pl.BlockSpec((tm, Kp), lambda i: (i, 0)),
            pl.BlockSpec((Kp, Cout), lambda i: (0, 0)),
            pl.BlockSpec((1, Cout), lambda i: (0, 0)),
            pl.BlockSpec((1, Cout), lambda i: (0, 0)),
        ],
        out_specs=pl.BlockSpec((tm, Cout), lambda i: (i, 0)),
        compiler_params=pltpu.CompilerParams(dimension_semantics=("parallel",)),
    )(p, w2, s2, b2)
    return out[:M].reshape(N, Ho, Wo, Cout)


def stem_head(x_nhwc, conv_p, left1_p):
    """First 3x3/s2 ConvBNReLU fused with the 1x1 'left' ConvBNReLU (two outputs)."""
    w0, s0, b0 = conv_p
    w1, s1, b1 = left1_p
    patches, (N, Ho, Wo) = _im2col(x_nhwc.astype(jnp.bfloat16), 3, 2, 1)
    p, w0m, tm, Mp, M, Kp, C0 = _prep_operands(patches, w0)
    C1 = w1.shape[0]
    w1m = jnp.transpose(w1, (2, 3, 1, 0)).reshape(C0, C1).astype(jnp.bfloat16)
    s0v = s0.reshape(1, C0).astype(jnp.float32)
    b0v = b0.reshape(1, C0).astype(jnp.float32)
    s1v = s1.reshape(1, C1).astype(jnp.float32)
    b1v = b1.reshape(1, C1).astype(jnp.float32)

    feat, left = pl.pallas_call(
        _stem_head_kernel,
        out_shape=(jax.ShapeDtypeStruct((Mp, C0), jnp.bfloat16),
                   jax.ShapeDtypeStruct((Mp, C1), jnp.bfloat16)),
        grid=(Mp // tm,),
        in_specs=[
            pl.BlockSpec((tm, Kp), lambda i: (i, 0)),
            pl.BlockSpec((Kp, C0), lambda i: (0, 0)),
            pl.BlockSpec((1, C0), lambda i: (0, 0)),
            pl.BlockSpec((1, C0), lambda i: (0, 0)),
            pl.BlockSpec((C0, C1), lambda i: (0, 0)),
            pl.BlockSpec((1, C1), lambda i: (0, 0)),
            pl.BlockSpec((1, C1), lambda i: (0, 0)),
        ],
        out_specs=(pl.BlockSpec((tm, C0), lambda i: (i, 0)),
                   pl.BlockSpec((tm, C1), lambda i: (i, 0))),
        compiler_params=pltpu.CompilerParams(dimension_semantics=("parallel",)),
    )(p, w0m, s0v, b0v, w1m, s1v, b1v)
    feat = feat[:M].reshape(N, Ho, Wo, C0)
    left = left[:M].reshape(N, Ho, Wo, C1)
    return feat, left


def maxpool_3x3_s2_p1(x_nhwc):
    """nn.MaxPool2d(3, stride=2, padding=1): running max over the 9 shifted windows.

    No (9, M, C) stack is materialized (review option (a)); this is cheap
    elementwise glue that XLA fuses with the surrounding pad/slice/concat ops.
    """
    N, H, W, C = x_nhwc.shape
    Ho = (H + 2 - 3) // 2 + 1
    Wo = (W + 2 - 3) // 2 + 1
    neg = jnp.finfo(x_nhwc.dtype).min
    xp = jnp.pad(x_nhwc, ((0, 0), (1, 1), (1, 1), (0, 0)), constant_values=neg)
    out = None
    for kh in range(3):
        for kw in range(3):
            win = xp[:, kh:kh + 2 * (Ho - 1) + 1:2,
                        kw:kw + 2 * (Wo - 1) + 1:2, :]
            out = win if out is None else jnp.maximum(out, win)
    return out


# ----------------------------------------------------------------------------
# Parameter construction (deterministic, synthetic)
# ----------------------------------------------------------------------------
def _make_conv_bn_params(key, in_chan, out_chan, ks):
    k_w, k_g, k_b, k_m, k_v = jax.random.split(key, 5)
    weight = 0.1 * jax.random.normal(k_w, (out_chan, in_chan, ks, ks), jnp.float32)
    gamma = 1.0 + 0.1 * jax.random.normal(k_g, (out_chan,), jnp.float32)
    beta = 0.1 * jax.random.normal(k_b, (out_chan,), jnp.float32)
    running_mean = 0.05 * jax.random.normal(k_m, (out_chan,), jnp.float32)
    running_var = 0.5 + 0.1 * jnp.abs(jax.random.normal(k_v, (out_chan,), jnp.float32))
    eps = 1e-5
    scale = gamma / jnp.sqrt(running_var + eps)       # fold eval-mode BN into affine
    bias = beta - running_mean * scale
    return weight, scale, bias


def make_stem_params(key):
    k0, k1, k2, k3 = jax.random.split(key, 4)
    return {
        "conv":  _make_conv_bn_params(k0, 3, 16, 3),   # ConvBNReLU(3, 16, 3, s=2)
        "left1": _make_conv_bn_params(k1, 16, 8, 1),   # ConvBNReLU(16, 8, 1, s=1, p=0)
        "left2": _make_conv_bn_params(k2, 8, 16, 3),   # ConvBNReLU(8, 16, 3, s=2)
        "fuse":  _make_conv_bn_params(k3, 32, 16, 3),  # ConvBNReLU(32, 16, 3, s=1)
    }


# ----------------------------------------------------------------------------
# StemBlock forward
# ----------------------------------------------------------------------------
@jax.jit
def stem_block_forward(x_nchw, params):
    x = jnp.transpose(x_nchw, (0, 2, 3, 1))                      # NCHW -> NHWC
    feat, left = stem_head(x, params["conv"], params["left1"])   # (N,H/2,W/2,16), (...,8)
    left = conv_bn_relu(left, *params["left2"], ks=3, stride=2, padding=1)   # (N,H/4,W/4,16)
    right = maxpool_3x3_s2_p1(feat)                                          # (N,H/4,W/4,16)
    fused = jnp.concatenate([left, right], axis=-1)              # channel cat (dim=1 in NCHW)
    fused = conv_bn_relu(fused, *params["fuse"], ks=3, stride=1, padding=1,
                         out_dtype=jnp.float32)
    return jnp.transpose(fused, (0, 3, 1, 2))                    # NHWC -> NCHW


if __name__ == "__main__":
    key = jax.random.PRNGKey(0)
    k_x, k_p = jax.random.split(key)
    x = jax.random.normal(k_x, (2, 3, 16, 16), jnp.float32)   # NCHW, like PyTorch
    params = make_stem_params(k_p)

    out = stem_block_forward(x, params)
    out = jax.block_until_ready(out)

    assert out.shape == (2, 16, 4, 4), out.shape   # StemBlock downsamples 4x, 16 channels
    assert out.dtype == jnp.float32
    assert bool(jnp.all(jnp.isfinite(out)))
    print("KERNEL_OK")
</pallas_src>

<mosaic_0001>
module attributes {stable_mosaic.version = 11 : i64} {
  func.func @_stem_head_kernel(%arg0: i32, %arg1: memref<128x32xbf16, #tpu.memory_space<vmem>>, %arg2: memref<32x16xbf16, #tpu.memory_space<vmem>>, %arg3: memref<1x16xf32, #tpu.memory_space<vmem>>, %arg4: memref<1x16xf32, #tpu.memory_space<vmem>>, %arg5: memref<16x8xbf16, #tpu.memory_space<vmem>>, %arg6: memref<1x8xf32, #tpu.memory_space<vmem>>, %arg7: memref<1x8xf32, #tpu.memory_space<vmem>>, %arg8: memref<128x16xbf16, #tpu.memory_space<vmem>>, %arg9: memref<128x8xbf16, #tpu.memory_space<vmem>>) attributes {dimension_semantics = [#tpu.dimension_semantics<parallel>], iteration_bounds = array<i64: 1>, scalar_prefetch = 0 : i64, scratch_operands = 0 : i64, tpu.core_type = #tpu.core_type<tc>, window_params = [{transform_indices = @transform_0, window_bounds = array<i64: 128, 32>}, {pipeline_mode = #tpu.pipeline_mode<synchronous>, transform_indices = @transform_1, window_bounds = array<i64: 32, 16>}, {pipeline_mode = #tpu.pipeline_mode<synchronous>, transform_indices = @transform_2, window_bounds = array<i64: 1, 16>}, {pipeline_mode = #tpu.pipeline_mode<synchronous>, transform_indices = @transform_3, window_bounds = array<i64: 1, 16>}, {pipeline_mode = #tpu.pipeline_mode<synchronous>, transform_indices = @transform_4, window_bounds = array<i64: 16, 8>}, {pipeline_mode = #tpu.pipeline_mode<synchronous>, transform_indices = @transform_5, window_bounds = array<i64: 1, 8>}, {pipeline_mode = #tpu.pipeline_mode<synchronous>, transform_indices = @transform_6, window_bounds = array<i64: 1, 8>}, {transform_indices = @transform_7, window_bounds = array<i64: 128, 16>}, {transform_indices = @transform_8, window_bounds = array<i64: 128, 8>}]} {
    %c0 = arith.constant 0 : index
    %c0_0 = arith.constant 0 : index
    %0 = vector.load %arg1[%c0, %c0_0] : memref<128x32xbf16, #tpu.memory_space<vmem>>, vector<128x32xbf16>
    %c0_1 = arith.constant 0 : index
    %c0_2 = arith.constant 0 : index
    %1 = vector.load %arg2[%c0_1, %c0_2] : memref<32x16xbf16, #tpu.memory_space<vmem>>, vector<32x16xbf16>
    %cst = arith.constant dense<0.000000e+00> : vector<128x16xf32>
    %2 = tpu.matmul %0, %1, %cst {dimension_numbers = #tpu.dot_dimension_numbers<[1], [0], [0], [1], [0, 0, 1, 1], [], []>} : vector<128x32xbf16>, vector<32x16xbf16>, vector<128x16xf32> -> vector<128x16xf32>
    %c0_3 = arith.constant 0 : index
    %c0_4 = arith.constant 0 : index
    %3 = vector.load %arg3[%c0_3, %c0_4] : memref<1x16xf32, #tpu.memory_space<vmem>>, vector<1x16xf32>
    %4 = vector.broadcast %3 : vector<1x16xf32> to vector<128x16xf32>
    %5 = arith.mulf %2, %4 : vector<128x16xf32>
    %c0_5 = arith.constant 0 : index
    %c0_6 = arith.constant 0 : index
    %6 = vector.load %arg4[%c0_5, %c0_6] : memref<1x16xf32, #tpu.memory_space<vmem>>, vector<1x16xf32>
    %7 = vector.broadcast %6 : vector<1x16xf32> to vector<128x16xf32>
    %8 = arith.addf %5, %7 : vector<128x16xf32>
    %cst_7 = arith.constant 0.000000e+00 : f32
    %9 = vector.broadcast %cst_7 : f32 to vector<128x16xf32>
    %10 = arith.maximumf %8, %9 : vector<128x16xf32>
    %11 = arith.truncf %10 : vector<128x16xf32> to vector<128x16xbf16>
    %c0_8 = arith.constant 0 : index
    %c0_9 = arith.constant 0 : index
    %12 = vector.load %arg8[%c0_8, %c0_9] : memref<128x16xbf16, #tpu.memory_space<vmem>>, vector<128x16xbf16>
    tpu.vector_store %arg8[%c0_8, %c0_9], %11 {strides = array<i32>} : memref<128x16xbf16, #tpu.memory_space<vmem>>, vector<128x16xbf16>,
    %13 = arith.truncf %10 : vector<128x16xf32> to vector<128x16xbf16>
    %c0_10 = arith.constant 0 : index
    %c0_11 = arith.constant 0 : index
    %14 = vector.load %arg5[%c0_10, %c0_11] : memref<16x8xbf16, #tpu.memory_space<vmem>>, vector<16x8xbf16>
    %cst_12 = arith.constant dense<0.000000e+00> : vector<128x8xf32>
    %15 = tpu.matmul %13, %14, %cst_12 {dimension_numbers = #tpu.dot_dimension_numbers<[1], [0], [0], [1], [0, 0, 1, 1], [], []>} : vector<128x16xbf16>, vector<16x8xbf16>, vector<128x8xf32> -> vector<128x8xf32>
    %c0_13 = arith.constant 0 : index
    %c0_14 = arith.constant 0 : index
    %16 = vector.load %arg6[%c0_13, %c0_14] : memref<1x8xf32, #tpu.memory_space<vmem>>, vector<1x8xf32>
    %17 = vector.broadcast %16 : vector<1x8xf32> to vector<128x8xf32>
    %18 = arith.mulf %15, %17 : vector<128x8xf32>
    %c0_15 = arith.constant 0 : index
    %c0_16 = arith.constant 0 : index
    %19 = vector.load %arg7[%c0_15, %c0_16] : memref<1x8xf32, #tpu.memory_space<vmem>>, vector<1x8xf32>
    %20 = vector.broadcast %19 : vector<1x8xf32> to vector<128x8xf32>
    %21 = arith.addf %18, %20 : vector<128x8xf32>
    %cst_17 = arith.constant 0.000000e+00 : f32
    %22 = vector.broadcast %cst_17 : f32 to vector<128x8xf32>
    %23 = arith.maximumf %21, %22 : vector<128x8xf32>
    %24 = arith.truncf %23 : vector<128x8xf32> to vector<128x8xbf16>
    %c0_18 = arith.constant 0 : index
    %c0_19 = arith.constant 0 : index
    %25 = vector.load %arg9[%c0_18, %c0_19] : memref<128x8xbf16, #tpu.memory_space<vmem>>, vector<128x8xbf16>
    tpu.vector_store %arg9[%c0_18, %c0_19], %24 {strides = array<i32>} : memref<128x8xbf16, #tpu.memory_space<vmem>>, vector<128x8xbf16>,
    return
  }
  func.func @transform_0(%arg0: i32) -> (i32, i32) {
    %c0_i32 = arith.constant 0 : i32
    %c0_i32_0 = arith.constant 0 : i32
    return %arg0, %c0_i32 : i32, i32
  }
  func.func @transform_1(%arg0: i32) -> (i32, i32) {
    %c0_i32 = arith.constant 0 : i32
    %c0_i32_0 = arith.constant 0 : i32
    %c0_i32_1 = arith.constant 0 : i32
    return %c0_i32, %c0_i32_0 : i32, i32
  }
  func.func @transform_2(%arg0: i32) -> (i32, i32) {
    %c0_i32 = arith.constant 0 : i32
    %c0_i32_0 = arith.constant 0 : i32
    %c0_i32_1 = arith.constant 0 : i32
    return %c0_i32, %c0_i32_0 : i32, i32
  }
  func.func @transform_3(%arg0: i32) -> (i32, i32) {
    %c0_i32 = arith.constant 0 : i32
    %c0_i32_0 = arith.constant 0 : i32
    %c0_i32_1 = arith.constant 0 : i32
    return %c0_i32, %c0_i32_0 : i32, i32
  }
  func.func @transform_4(%arg0: i32) -> (i32, i32) {
    %c0_i32 = arith.constant 0 : i32
    %c0_i32_0 = arith.constant 0 : i32
    %c0_i32_1 = arith.constant 0 : i32
    return %c0_i32, %c0_i32_0 : i32, i32
  }
  func.func @transform_5(%arg0: i32) -> (i32, i32) {
    %c0_i32 = arith.constant 0 : i32
    %c0_i32_0 = arith.constant 0 : i32
    %c0_i32_1 = arith.constant 0 : i32
    return %c0_i32, %c0_i32_0 : i32, i32
  }
  func.func @transform_6(%arg0: i32) -> (i32, i32) {
    %c0_i32 = arith.constant 0 : i32
    %c0_i32_0 = arith.constant 0 : i32
    %c0_i32_1 = arith.constant 0 : i32
    return %c0_i32, %c0_i32_0 : i32, i32
  }
  func.func @transform_7(%arg0: i32) -> (i32, i32) {
    %c0_i32 = arith.constant 0 : i32
    %c0_i32_0 = arith.constant 0 : i32
    return %arg0, %c0_i32 : i32, i32
  }
  func.func @transform_8(%arg0: i32) -> (i32, i32) {
    %c0_i32 = arith.constant 0 : i32
    %c0_i32_0 = arith.constant 0 : i32
    return %arg0, %c0_i32 : i32, i32
  }
}

module attributes {stable_mosaic.version = 11 : i64} {
  func.func @_conv_bn_relu_kernel(%arg0: i32, %arg1: memref<32x72xbf16, #tpu.memory_space<vmem>>, %arg2: memref<72x16xbf16, #tpu.memory_space<vmem>>, %arg3: memref<1x16xf32, #tpu.memory_space<vmem>>, %arg4: memref<1x16xf32, #tpu.memory_space<vmem>>, %arg5: memref<32x16xbf16, #tpu.memory_space<vmem>>) attributes {dimension_semantics = [#tpu.dimension_semantics<parallel>], iteration_bounds = array<i64: 1>, scalar_prefetch = 0 : i64, scratch_operands = 0 : i64, tpu.core_type = #tpu.core_type<tc>, window_params = [{transform_indices = @transform_0, window_bounds = array<i64: 32, 72>}, {pipeline_mode = #tpu.pipeline_mode<synchronous>, transform_indices = @transform_1, window_bounds = array<i64: 72, 16>}, {pipeline_mode = #tpu.pipeline_mode<synchronous>, transform_indices = @transform_2, window_bounds = array<i64: 1, 16>}, {pipeline_mode = #tpu.pipeline_mode<synchronous>, transform_indices = @transform_3, window_bounds = array<i64: 1, 16>}, {transform_indices = @transform_4, window_bounds = array<i64: 32, 16>}]} {
    %c0 = arith.constant 0 : index
    %c0_0 = arith.constant 0 : index
    %0 = vector.load %arg1[%c0, %c0_0] : memref<32x72xbf16, #tpu.memory_space<vmem>>, vector<32x72xbf16>
    %c0_1 = arith.constant 0 : index
    %c0_2 = arith.constant 0 : index
    %1 = vector.load %arg2[%c0_1, %c0_2] : memref<72x16xbf16, #tpu.memory_space<vmem>>, vector<72x16xbf16>
    %cst = arith.constant dense<0.000000e+00> : vector<32x16xf32>
    %2 = tpu.matmul %0, %1, %cst {dimension_numbers = #tpu.dot_dimension_numbers<[1], [0], [0], [1], [0, 0, 1, 1], [], []>} : vector<32x72xbf16>, vector<72x16xbf16>, vector<32x16xf32> -> vector<32x16xf32>
    %c0_3 = arith.constant 0 : index
    %c0_4 = arith.constant 0 : index
    %3 = vector.load %arg3[%c0_3, %c0_4] : memref<1x16xf32, #tpu.memory_space<vmem>>, vector<1x16xf32>
    %4 = vector.broadcast %3 : vector<1x16xf32> to vector<32x16xf32>
    %5 = arith.mulf %2, %4 : vector<32x16xf32>
    %c0_5 = arith.constant 0 : index
    %c0_6 = arith.constant 0 : index
    %6 = vector.load %arg4[%c0_5, %c0_6] : memref<1x16xf32, #tpu.memory_space<vmem>>, vector<1x16xf32>
    %7 = vector.broadcast %6 : vector<1x16xf32> to vector<32x16xf32>
    %8 = arith.addf %5, %7 : vector<32x16xf32>
    %cst_7 = arith.constant 0.000000e+00 : f32
    %9 = vector.broadcast %cst_7 : f32 to vector<32x16xf32>
    %10 = arith.maximumf %8, %9 : vector<32x16xf32>
    %11 = arith.truncf %10 : vector<32x16xf32> to vector<32x16xbf16>
    %c0_8 = arith.constant 0 : index
    %c0_9 = arith.constant 0 : index
    %12 = vector.load %arg5[%c0_8, %c0_9] : memref<32x16xbf16, #tpu.memory_space<vmem>>, vector<32x16xbf16>
    tpu.vector_store %arg5[%c0_8, %c0_9], %11 {strides = array<i32>} : memref<32x16xbf16, #tpu.memory_space<vmem>>, vector<32x16xbf16>,
    return
  }
  func.func @transform_0(%arg0: i32) -> (i32, i32) {
    %c0_i32 = arith.constant 0 : i32
    %c0_i32_0 = arith.constant 0 : i32
    return %arg0, %c0_i32 : i32, i32
  }
  func.func @transform_1(%arg0: i32) -> (i32, i32) {
    %c0_i32 = arith.constant 0 : i32
    %c0_i32_0 = arith.constant 0 : i32
    %c0_i32_1 = arith.constant 0 : i32
    return %c0_i32, %c0_i32_0 : i32, i32
  }
  func.func @transform_2(%arg0: i32) -> (i32, i32) {
    %c0_i32 = arith.constant 0 : i32
    %c0_i32_0 = arith.constant 0 : i32
    %c0_i32_1 = arith.constant 0 : i32
    return %c0_i32, %c0_i32_0 : i32, i32
  }
  func.func @transform_3(%arg0: i32) -> (i32, i32) {
    %c0_i32 = arith.constant 0 : i32
    %c0_i32_0 = arith.constant 0 : i32
    %c0_i32_1 = arith.constant 0 : i32
    return %c0_i32, %c0_i32_0 : i32, i32
  }
  func.func @transform_4(%arg0: i32) -> (i32, i32) {
    %c0_i32 = arith.constant 0 : i32
    %c0_i32_0 = arith.constant 0 : i32
    return %arg0, %c0_i32 : i32, i32
  }
}

module attributes {stable_mosaic.version = 11 : i64} {
  func.func @_conv_bn_relu_kernel(%arg0: i32, %arg1: memref<32x288xbf16, #tpu.memory_space<vmem>>, %arg2: memref<288x16xbf16, #tpu.memory_space<vmem>>, %arg3: memref<1x16xf32, #tpu.memory_space<vmem>>, %arg4: memref<1x16xf32, #tpu.memory_space<vmem>>, %arg5: memref<32x16xf32, #tpu.memory_space<vmem>>) attributes {dimension_semantics = [#tpu.dimension_semantics<parallel>], iteration_bounds = array<i64: 1>, scalar_prefetch = 0 : i64, scratch_operands = 0 : i64, tpu.core_type = #tpu.core_type<tc>, window_params = [{transform_indices = @transform_0, window_bounds = array<i64: 32, 288>}, {pipeline_mode = #tpu.pipeline_mode<synchronous>, transform_indices = @transform_1, window_bounds = array<i64: 288, 16>}, {pipeline_mode = #tpu.pipeline_mode<synchronous>, transform_indices = @transform_2, window_bounds = array<i64: 1, 16>}, {pipeline_mode = #tpu.pipeline_mode<synchronous>, transform_indices = @transform_3, window_bounds = array<i64: 1, 16>}, {transform_indices = @transform_4, window_bounds = array<i64: 32, 16>}]} {
    %c0 = arith.constant 0 : index
    %c0_0 = arith.constant 0 : index
    %0 = vector.load %arg1[%c0, %c0_0] : memref<32x288xbf16, #tpu.memory_space<vmem>>, vector<32x288xbf16>
    %c0_1 = arith.constant 0 : index
    %c0_2 = arith.constant 0 : index
    %1 = vector.load %arg2[%c0_1, %c0_2] : memref<288x16xbf16, #tpu.memory_space<vmem>>, vector<288x16xbf16>
    %cst = arith.constant dense<0.000000e+00> : vector<32x16xf32>
    %2 = tpu.matmul %0, %1, %cst {dimension_numbers = #tpu.dot_dimension_numbers<[1], [0], [0], [1], [0, 0, 1, 1], [], []>} : vector<32x288xbf16>, vector<288x16xbf16>, vector<32x16xf32> -> vector<32x16xf32>
    %c0_3 = arith.constant 0 : index
    %c0_4 = arith.constant 0 : index
    %3 = vector.load %arg3[%c0_3, %c0_4] : memref<1x16xf32, #tpu.memory_space<vmem>>, vector<1x16xf32>
    %4 = vector.broadcast %3 : vector<1x16xf32> to vector<32x16xf32>
    %5 = arith.mulf %2, %4 : vector<32x16xf32>
    %c0_5 = arith.constant 0 : index
    %c0_6 = arith.constant 0 : index
    %6 = vector.load %arg4[%c0_5, %c0_6] : memref<1x16xf32, #tpu.memory_space<vmem>>, vector<1x16xf32>
    %7 = vector.broadcast %6 : vector<1x16xf32> to vector<32x16xf32>
    %8 = arith.addf %5, %7 : vector<32x16xf32>
    %cst_7 = arith.constant 0.000000e+00 : f32
    %9 = vector.broadcast %cst_7 : f32 to vector<32x16xf32>
    %10 = arith.maximumf %8, %9 : vector<32x16xf32>
    %c0_8 = arith.constant 0 : index
    %c0_9 = arith.constant 0 : index
    %11 = vector.load %arg5[%c0_8, %c0_9] : memref<32x16xf32, #tpu.memory_space<vmem>>, vector<32x16xf32>
    tpu.vector_store %arg5[%c0_8, %c0_9], %10 {strides = array<i32>} : memref<32x16xf32, #tpu.memory_space<vmem>>, vector<32x16xf32>,
    return
  }
  func.func @transform_0(%arg0: i32) -> (i32, i32) {
    %c0_i32 = arith.constant 0 : i32
    %c0_i32_0 = arith.constant 0 : i32
    return %arg0, %c0_i32 : i32, i32
  }
  func.func @transform_1(%arg0: i32) -> (i32, i32) {
    %c0_i32 = arith.constant 0 : i32
    %c0_i32_0 = arith.constant 0 : i32
    %c0_i32_1 = arith.constant 0 : i32
    return %c0_i32, %c0_i32_0 : i32, i32
  }
  func.func @transform_2(%arg0: i32) -> (i32, i32) {
    %c0_i32 = arith.constant 0 : i32
    %c0_i32_0 = arith.constant 0 : i32
    %c0_i32_1 = arith.constant 0 : i32
    return %c0_i32, %c0_i32_0 : i32, i32
  }
  func.func @transform_3(%arg0: i32) -> (i32, i32) {
    %c0_i32 = arith.constant 0 : i32
    %c0_i32_0 = arith.constant 0 : i32
    %c0_i32_1 = arith.constant 0 : i32
    return %c0_i32, %c0_i32_0 : i32, i32
  }
  func.func @transform_4(%arg0: i32) -> (i32, i32) {
    %c0_i32 = arith.constant 0 : i32
    %c0_i32_0 = arith.constant 0 : i32
    return %arg0, %c0_i32 : i32, i32
  }
}

</mosaic_0001>

<llo_original>
// kernel: stem_block_forward.4
$region0: #{stem_block_forward.4}
  #allocation0 [shape = 'u32[]', space=smem, size = 0x4, offset = 0x4, fixed_abs, tag = 'smem constant byte address 0x4 - core index']
  #allocation1 [shape = 'u32[144,128]{1,0:T(1,128)}', space=vmem, size = 0x12000, scoped, tag = 'internal scratch']
  %s0 = inlined_call_operand.vmem [shape: bf16[32,72], index: 0, kind: input, shape index: {}]
  %s1 = inlined_call_operand.vmem [shape: bf16[72,16], index: 1, kind: input, shape index: {}]
  %s2 = inlined_call_operand.vmem [shape: f32[1,16], index: 2, kind: input, shape index: {}]
  %s3 = inlined_call_operand.vmem [shape: f32[1,16], index: 3, kind: input, shape index: {}]
  %s4 = inlined_call_operand.vmem [shape: bf16[32,16], index: 4, kind: output, shape index: {}]
  %s5 = sld [smem:[#allocation0]]
  $region26: #{stem_block_forward.4} parent=0
    _
  %s7 = ssub.s32 1, %s5
  %s8 = scalar_select 0, %s7, %s5
  // Predicated region
  $region2: #{stem_block_forward.4} parent=0 // pred_check
    _
  $region3: #{stem_block_forward.4} parent=0 // pred_check_branch
    %10 = sbr.rel (0) target = $region5
  $region4: #{stem_block_forward.4} parent=0 // pred_region
    _
  $region5: #{stem_block_forward.4} parent=0 // pred_fallthru
    _
  // Predicated region
  $region6: #{stem_block_forward.4} parent=0 // pred_check
    _
  $region7: #{stem_block_forward.4} parent=0 // pred_check_branch
    %12 = sbr.rel (0) target = $region9
  $region8: #{stem_block_forward.4} parent=0 // pred_region
    _
  $region9: #{stem_block_forward.4} parent=0 // pred_fallthru
    _
  // Predicated region
  $region10: #{stem_block_forward.4} parent=0 // pred_check
    _
  $region11: #{stem_block_forward.4} parent=0 // pred_check_branch
    %14 = sbr.rel (0) target = $region13
  $region12: #{stem_block_forward.4} parent=0 // pred_region
    _
  $region13: #{stem_block_forward.4} parent=0 // pred_fallthru
    _
  // Predicated region
  $region14: #{stem_block_forward.4} parent=0 // pred_check
    _
  $region15: #{stem_block_forward.4} parent=0 // pred_check_branch
    %16 = sbr.rel (0) target = $region17
  $region16: #{stem_block_forward.4} parent=0 // pred_region
    _
  $region17: #{stem_block_forward.4} parent=0 // pred_fallthru
    _
  %v18 = vld [vmem:[%s0] sm:$0xf]
  %v19 = vld [vmem:[%s0 + $0x4] sm:$0xf]
  %v20 = vld [vmem:[%s0 + $0x8] sm:$0xf]
  %v21 = vld [vmem:[%s0 + $0xc] sm:$0xf]
  %v22 = vld [vmem:[%s1] sm:$0xf]
  %v23 = vld [vmem:[%s1 + $0x4] sm:$0xf]
  %v24 = vld [vmem:[%s1 + $0x8] sm:$0xf]
  %v25 = vld [vmem:[%s1 + $0xc] sm:$0xf]
  %v26 = vld [vmem:[%s1 + $0x10] sm:$0xf]
  %v27 = vld [vmem:[%s1 + $0x14] sm:$0xf]
  %v28 = vld [vmem:[%s1 + $0x18] sm:$0xf]
  %v29 = vld [vmem:[%s1 + $0x1c] sm:$0xf]
  %v30 = vld [vmem:[%s1 + $0x20] sm:$0xf]
  %v35 = vunpack.c.l.b16 %v18
  %v36 = vunpack.c.l.b16 %v19
  %v37 = vunpack.c.l.b16 %v20
  %v38 = vunpack.c.l.b16 %v21
  %v39 = vpack.c.b16 %v36, %v35
  %v40 = vpack.c.b16 %v38, %v37
  %v50 = vunpack.c.l.b16 %v22
  %v51 = vunpack.c.l.b16 %v23
  %v52 = vunpack.c.l.b16 %v24
  %v53 = vunpack.c.l.b16 %v25
  %v54 = vunpack.c.l.b16 %v26
  %v55 = vunpack.c.l.b16 %v27
  %v56 = vunpack.c.l.b16 %v28
  %v57 = vunpack.c.l.b16 %v29
  %v58 = vunpack.c.l.b16 %v30
  %v59 = vpack.c.b16 %v51, %v50
  %v60 = vpack.c.b16 %v53, %v52
  %v61 = vpack.c.b16 %v55, %v54
  %v62 = vpack.c.b16 %v57, %v56
  %v63 = vpack.c.b16 %v58, %v58
  %vm68 = vcmask 588800
  %v70 = vsel %vm68, %v39, 0
  %v73 = vsel %vm68, %v40, 0
  %vm75 = vcmask 1043456
  %v77 = vsel %vm75, %v63, 0
  %79 = vmatprep.subr.bf16.mxu0 0
  %80 = vmatpush1.bf16.msra.mxu0 %v59
  %81 = vmatprep.subr.bf16.mxu0 0
  %82 = vmatpush1.bf16.msra.mxu0 %v60
  %83 = vmatprep.subr.bf16.mxu0 0
  %84 = vmatpush1.bf16.msra.mxu0 %v61
  %85 = vmatprep.subr.bf16.mxu0 0
  %86 = vmatpush1.bf16.msra.mxu0 %v62
  %87 = vmatprep.subr.bf16.mxu0 0
  %88 = vmatpush1.bf16.msra.mxu0 %v77
  %89 = vmatprep.subr.bf16.mxu0 0
  %90 = vmatpush1.bf16.msra.mxu0 0
  %91 = vmatprep.subr.bf16.mxu0 0
  %92 = vmatpush1.bf16.msra.mxu0 0
  %93 = vmatprep.subr.bf16.mxu0 0
  %94 = vmatpush1.bf16.msra.mxu0 0
  %95 = vmatprep.subr.bf16.mxu0 0
  %96 = vmatpush1.bf16.msra.mxu0 0
  %97 = vmatprep.subr.bf16.mxu0 0
  %98 = vmatpush1.bf16.msra.mxu0 0
  %99 = vmatprep.subr.bf16.mxu0 0
  %100 = vmatpush1.bf16.msra.mxu0 0
  %101 = vmatprep.subr.bf16.mxu0 0
  %102 = vmatpush1.bf16.msra.mxu0 0
  %103 = vmatprep.subr.bf16.mxu0 0
  %104 = vmatpush1.bf16.msra.mxu0 0
  %105 = vmatprep.subr.bf16.mxu0 0
  %106 = vmatpush1.bf16.msra.mxu0 0
  %107 = vmatprep.subr.bf16.mxu0 0
  %108 = vmatpush1.bf16.msra.mxu0 0
  %109 = vmatprep.subr.bf16.mxu0 0
  %110 = vmatpush1.bf16.msra.mxu0 0
  %111 = vmatprep.mubr.bf16.mxu0 0
  %112 = vmatmul.mubr.bf16.gmra.mrb[0].mxu0 %v70
  %v113 = vpop.f32.mrb[0].mxu0
  %v114 = vadd.f32 0.0, %v113
  %v115 = vpop.f32.mrb[0].mxu0
  %v116 = vpop.f32.mrb[0].mxu0
  %v117 = vadd.f32 0.0, %v116
  %v118 = vpop.f32.mrb[0].mxu0
  %119 = vmatprep.mubr.bf16.mxu0 0
  %120 = vmatmul.mubr.bf16.gmra.mrb[0].mxu0 %v73
  %v121 = vpop.f32.mrb[0].mxu0
  %v122 = vadd.f32 0.0, %v121
  %v123 = vpop.f32.mrb[0].mxu0
  %v124 = vpop.f32.mrb[0].mxu0
  %v125 = vadd.f32 0.0, %v124
  %v126 = vpop.f32.mrb[0].mxu0
  %127 = vdwg.mxu0
  %v128 = vld [vmem:[%s2] sm:$0x1]
  %v130 = vlaneseq
  %v131 = vshrl.u32 %v130, 7
  %v132 = vsub.s32 0, %v131
  %v133 = vrot.slane %v128, %v132
  %v135 = vmul.f32 %v114, %v133
  %v136 = vmul.f32 %v117, %v133
  %v137 = vmul.f32 %v122, %v133
  %v138 = vmul.f32 %v125, %v133
  %v139 = vld [vmem:[%s3] sm:$0x1]
  %v141 = vlaneseq
  %v142 = vshrl.u32 %v141, 7
  %v143 = vsub.s32 0, %v142
  %v144 = vrot.slane %v139, %v143
  %v146 = vadd.f32 %v135, %v144
  %v147 = vadd.f32 %v136, %v144
  %v148 = vadd.f32 %v137, %v144
  %v149 = vadd.f32 %v138, %v144
  %v150 = vmax.f32 %v146, 0.0
  %v151 = vmax.f32 %v147, 0.0
  %v152 = vmax.f32 %v148, 0.0
  %v153 = vmax.f32 %v149, 0.0
  %v154 = vpack.c.bf16 %v151, %v150
  %v155 = vpack.c.bf16 %v153, %v152
  %v158 = vunpack.c.l.b16 %v154
  %v159 = vunpack.c.h.b16 %v154
  %v160 = vunpack.c.l.b16 %v155
  %v161 = vunpack.c.h.b16 %v155
  %v162 = vpack.c.b16 %v158, %v158
  %v163 = vpack.c.b16 %v159, %v159
  %v164 = vpack.c.b16 %v160, %v160
  %v165 = vpack.c.b16 %v161, %v161
  %vm170 = vcmask 125952
  %171 = vst.msk [vmem:[%s4] sm:$0xf] %vm170, %v162
  %172 = vst.msk [vmem:[%s4 + $0x4] sm:$0xf] %vm170, %v163
  %173 = vst.msk [vmem:[%s4 + $0x8] sm:$0xf] %vm170, %v164
  %174 = vst.msk [vmem:[%s4 + $0xc] sm:$0xf] %vm170, %v165
  // Predicated region
  $region18: #{stem_block_forward.4} parent=0 // pred_check
    _
  $region19: #{stem_block_forward.4} parent=0 // pred_check_branch
    %176 = sbr.rel (0) target = $region21
  $region20: #{stem_block_forward.4} parent=0 // pred_region
    _
  $region21: #{stem_block_forward.4} parent=0 // pred_fallthru
    _
  // Predicated region
  $region22: #{stem_block_forward.4} parent=0 // pred_check
    _
  $region23: #{stem_block_forward.4} parent=0 // pred_check_branch
    %178 = sbr.rel (0) target = $region25
  $region24: #{stem_block_forward.4} parent=0 // pred_region
    _
  $region25: #{stem_block_forward.4} parent=0 // pred_fallthru
    _

// kernel: stem_block_forward.3
$region0: #{stem_block_forward.3}
  #allocation0 [shape = 'u32[]', space=smem, size = 0x4, offset = 0x4, fixed_abs, tag = 'smem constant byte address 0x4 - core index']
  #allocation1 [shape = 'u32[144,128]{1,0:T(1,128)}', space=vmem, size = 0x12000, scoped, tag = 'internal scratch']
  %s0 = inlined_call_operand.vmem [shape: bf16[128,32], index: 0, kind: input, shape index: {}]
  %s1 = inlined_call_operand.vmem [shape: bf16[32,16], index: 1, kind: input, shape index: {}]
  %s2 = inlined_call_operand.vmem [shape: f32[1,16], index: 2, kind: input, shape index: {}]
  %s3 = inlined_call_operand.vmem [shape: f32[1,16], index: 3, kind: input, shape index: {}]
  %s4 = inlined_call_operand.vmem [shape: bf16[16,8], index: 4, kind: input, shape index: {}]
  %s5 = inlined_call_operand.vmem [shape: f32[1,8], index: 5, kind: input, shape index: {}]
  %s6 = inlined_call_operand.vmem [shape: f32[1,8], index: 6, kind: input, shape index: {}]
  %s7 = inlined_call_operand.vmem [shape: bf16[128,16], index: 7, kind: output, shape index: {0}]
  %s8 = inlined_call_operand.vmem [shape: bf16[128,8], index: 8, kind: output, shape index: {1}]
  %9 = xla_tuple %s7, %s8
  %s10 = sld [smem:[#allocation0]]
  $region46: #{stem_block_forward.3} parent=0
    _
  %s12 = ssub.s32 1, %s10
  %s13 = scalar_select 0, %s12, %s10
  // Predicated region
  $region2: #{stem_block_forward.3} parent=0 // pred_check
    _
  $region3: #{stem_block_forward.3} parent=0 // pred_check_branch
    %15 = sbr.rel (0) target = $region5
  $region4: #{stem_block_forward.3} parent=0 // pred_region
    _
  $region5: #{stem_block_forward.3} parent=0 // pred_fallthru
    _
  // Predicated region
  $region6: #{stem_block_forward.3} parent=0 // pred_check
    _
  $region7: #{stem_block_forward.3} parent=0 // pred_check_branch
    %17 = sbr.rel (0) target = $region9
  $region8: #{stem_block_forward.3} parent=0 // pred_region
    _
  $region9: #{stem_block_forward.3} parent=0 // pred_fallthru
    _
  // Predicated region
  $region10: #{stem_block_forward.3} parent=0 // pred_check
    _
  $region11: #{stem_block_forward.3} parent=0 // pred_check_branch
    %19 = sbr.rel (0) target = $region13
  $region12: #{stem_block_forward.3} parent=0 // pred_region
    _
  $region13: #{stem_block_forward.3} parent=0 // pred_fallthru
    _
  // Predicated region
  $region14: #{stem_block_forward.3} parent=0 // pred_check
    _
  $region15: #{stem_block_forward.3} parent=0 // pred_check_branch
    %21 = sbr.rel (0) target = $region17
  $region16: #{stem_block_forward.3} parent=0 // pred_region
    _
  $region17: #{stem_block_forward.3} parent=0 // pred_fallthru
    _
  // Predicated region
  $region18: #{stem_block_forward.3} parent=0 // pred_check
    _
  $region19: #{stem_block_forward.3} parent=0 // pred_check_branch
    %23 = sbr.rel (0) target = $region21
  $region20: #{stem_block_forward.3} parent=0 // pred_region
    _
  $region21: #{stem_block_forward.3} parent=0 // pred_fallthru
    _
  // Predicated region
  $region22: #{stem_block_forward.3} parent=0 // pred_check
    _
  $region23: #{stem_block_forward.3} parent=0 // pred_check_branch
    %25 = sbr.rel (0) target = $region25
  $region24: #{stem_block_forward.3} parent=0 // pred_region
    _
  $region25: #{stem_block_forward.3} parent=0 // pred_fallthru
    _
  // Predicated region
  $region26: #{stem_block_forward.3} parent=0 // pred_check
    _
  $region27: #{stem_block_forward.3} parent=0 // pred_check_branch
    %27 = sbr.rel (0) target = $region29
  $region28: #{stem_block_forward.3} parent=0 // pred_region
    _
  $region29: #{stem_block_forward.3} parent=0 // pred_fallthru
    _
  %v29 = vld [vmem:[%s0] sm:$0xf]
  %v30 = vld [vmem:[%s0 + $0x4] sm:$0xf]
  %v31 = vld [vmem:[%s0 + $0x8] sm:$0xf]
  %v32 = vld [vmem:[%s0 + $0xc] sm:$0xf]
  %v33 = vld [vmem:[%s0 + $0x10] sm:$0xf]
  %v34 = vld [vmem:[%s0 + $0x14] sm:$0xf]
  %v35 = vld [vmem:[%s0 + $0x18] sm:$0xf]
  %v36 = vld [vmem:[%s0 + $0x1c] sm:$0xf]
  %v37 = vld [vmem:[%s0 + $0x20] sm:$0xf]
  %v38 = vld [vmem:[%s0 + $0x24] sm:$0xf]
  %v39 = vld [vmem:[%s0 + $0x28] sm:$0xf]
  %v40 = vld [vmem:[%s0 + $0x2c] sm:$0xf]
  %v41 = vld [vmem:[%s0 + $0x30] sm:$0xf]
  %v42 = vld [vmem:[%s0 + $0x34] sm:$0xf]
  %v43 = vld [vmem:[%s0 + $0x38] sm:$0xf]
  %v44 = vld [vmem:[%s0 + $0x3c] sm:$0xf]
  %v45 = vld [vmem:[%s1] sm:$0xf]
  %v46 = vld [vmem:[%s1 + $0x4] sm:$0xf]
  %v47 = vld [vmem:[%s1 + $0x8] sm:$0xf]
  %v48 = vld [vmem:[%s1 + $0xc] sm:$0xf]
  %v65 = vunpack.c.l.b16 %v29
  %v66 = vunpack.c.l.b16 %v30
  %v67 = vunpack.c.l.b16 %v31
  %v68 = vunpack.c.l.b16 %v32
  %v69 = vunpack.c.l.b16 %v33
  %v70 = vunpack.c.l.b16 %v34
  %v71 = vunpack.c.l.b16 %v35
  %v72 = vunpack.c.l.b16 %v36
  %v73 = vunpack.c.l.b16 %v37
  %v74 = vunpack.c.l.b16 %v38
  %v75 = vunpack.c.l.b16 %v39
  %v76 = vunpack.c.l.b16 %v40
  %v77 = vunpack.c.l.b16 %v41
  %v78 = vunpack.c.l.b16 %v42
  %v79 = vunpack.c.l.b16 %v43
  %v80 = vunpack.c.l.b16 %v44
  %v81 = vpack.c.b16 %v66, %v65
  %v82 = vpack.c.b16 %v68, %v67
  %v83 = vpack.c.b16 %v70, %v69
  %v84 = vpack.c.b16 %v72, %v71
  %v85 = vpack.c.b16 %v74, %v73
  %v86 = vpack.c.b16 %v76, %v75
  %v87 = vpack.c.b16 %v78, %v77
  %v88 = vpack.c.b16 %v80, %v79
  %v93 = vunpack.c.l.b16 %v45
  %v94 = vunpack.c.l.b16 %v46
  %v95 = vunpack.c.l.b16 %v47
  %v96 = vunpack.c.l.b16 %v48
  %v97 = vpack.c.b16 %v94, %v93
  %v98 = vpack.c.b16 %v96, %v95
  %vm101 = vcmask 261120
  %v103 = vsel %vm101, %v81, 0
  %v106 = vsel %vm101, %v82, 0
  %v109 = vsel %vm101, %v83, 0
  %v112 = vsel %vm101, %v84, 0
  %v115 = vsel %vm101, %v85, 0
  %v118 = vsel %vm101, %v86, 0
  %v121 = vsel %vm101, %v87, 0
  %v124 = vsel %vm101, %v88, 0
  %126 = vmatprep.subr.bf16.mxu0 0
  %127 = vmatpush1.bf16.msra.mxu0 %v97
  %128 = vmatprep.subr.bf16.mxu0 0
  %129 = vmatpush1.bf16.msra.mxu0 %v98
  %130 = vmatprep.subr.bf16.mxu0 0
  %131 = vmatpush1.bf16.msra.mxu0 0
  %132 = vmatprep.subr.bf16.mxu0 0
  %133 = vmatpush1.bf16.msra.mxu0 0
  %134 = vmatprep.subr.bf16.mxu0 0
  %135 = vmatpush1.bf16.msra.mxu0 0
  %136 = vmatprep.subr.bf16.mxu0 0
  %137 = vmatpush1.bf16.msra.mxu0 0
  %138 = vmatprep.subr.bf16.mxu0 0
  %139 = vmatpush1.bf16.msra.mxu0 0
  %140 = vmatprep.subr.bf16.mxu0 0
  %141 = vmatpush1.bf16.msra.mxu0 0
  %142 = vmatprep.subr.bf16.mxu0 0
  %143 = vmatpush1.bf16.msra.mxu0 0
  %144 = vmatprep.subr.bf16.mxu0 0
  %145 = vmatpush1.bf16.msra.mxu0 0
  %146 = vmatprep.subr.bf16.mxu0 0
  %147 = vmatpush1.bf16.msra.mxu0 0
  %148 = vmatprep.subr.bf16.mxu0 0
  %149 = vmatpush1.bf16.msra.mxu0 0
  %150 = vmatprep.subr.bf16.mxu0 0
  %151 = vmatpush1.bf16.msra.mxu0 0
  %152 = vmatprep.subr.bf16.mxu0 0
  %153 = vmatpush1.bf16.msra.mxu0 0
  %154 = vmatprep.subr.bf16.mxu0 0
  %155 = vmatpush1.bf16.msra.mxu0 0
  %156 = vmatprep.subr.bf16.mxu0 0
  %157 = vmatpush1.bf16.msra.mxu0 0
  %158 = vmatprep.mubr.bf16.mxu0 0
  %159 = vmatmul.mubr.bf16.gmra.mrb[0].mxu0 %v103
  %v160 = vpop.f32.mrb[0].mxu0
  %v161 = vadd.f32 0.0, %v160
  %v162 = vpop.f32.mrb[0].mxu0
  %v163 = vpop.f32.mrb[0].mxu0
  %v164 = vadd.f32 0.0, %v163
  %v165 = vpop.f32.mrb[0].mxu0
  %166 = vmatprep.mubr.bf16.mxu0 0
  %167 = vmatmul.mubr.bf16.gmra.mrb[0].mxu0 %v106
  %v168 = vpop.f32.mrb[0].mxu0
  %v169 = vadd.f32 0.0, %v168
  %v170 = vpop.f32.mrb[0].mxu0
  %v171 = vpop.f32.mrb[0].mxu0
  %v172 = vadd.f32 0.0, %v171
  %v173 = vpop.f32.mrb[0].mxu0
  %174 = vmatprep.mubr.bf16.mxu0 0
  %175 = vmatmul.mubr.bf16.gmra.mrb[0].mxu0 %v109
  %v176 = vpop.f32.mrb[0].mxu0
  %v177 = vadd.f32 0.0, %v176
  %v178 = vpop.f32.mrb[0].mxu0
  %v179 = vpop.f32.mrb[0].mxu0
  %v180 = vadd.f32 0.0, %v179
  %v181 = vpop.f32.mrb[0].mxu0
  %182 = vmatprep.mubr.bf16.mxu0 0
  %183 = vmatmul.mubr.bf16.gmra.mrb[0].mxu0 %v112
  %v184 = vpop.f32.mrb[0].mxu0
  %v185 = vadd.f32 0.0, %v184
  %v186 = vpop.f32.mrb[0].mxu0
  %v187 = vpop.f32.mrb[0].mxu0
  %v188 = vadd.f32 0.0, %v187
  %v189 = vpop.f32.mrb[0].mxu0
  %190 = vmatprep.mubr.bf16.mxu0 0
  %191 = vmatmul.mubr.bf16.gmra.mrb[0].mxu0 %v115
  %v192 = vpop.f32.mrb[0].mxu0
  %v193 = vadd.f32 0.0, %v192
  %v194 = vpop.f32.mrb[0].mxu0
  %v195 = vpop.f32.mrb[0].mxu0
  %v196 = vadd.f32 0.0, %v195
  %v197 = vpop.f32.mrb[0].mxu0
  %198 = vmatprep.mubr.bf16.mxu0 0
  %199 = vmatmul.mubr.bf16.gmra.mrb[0].mxu0 %v118
  %v200 = vpop.f32.mrb[0].mxu0
  %v201 = vadd.f32 0.0, %v200
  %v202 = vpop.f32.mrb[0].mxu0
  %v203 = vpop.f32.mrb[0].mxu0
  %v204 = vadd.f32 0.0, %v203
  %v205 = vpop.f32.mrb[0].mxu0
  %206 = vmatprep.mubr.bf16.mxu0 0
  %207 = vmatmul.mubr.bf16.gmra.mrb[0].mxu0 %v121
  %v208 = vpop.f32.mrb[0].mxu0
  %v209 = vadd.f32 0.0, %v208
  %v210 = vpop.f32.mrb[0].mxu0
  %v211 = vpop.f32.mrb[0].mxu0
  %v212 = vadd.f32 0.0, %v211
  %v213 = vpop.f32.mrb[0].mxu0
  %214 = vmatprep.mubr.bf16.mxu0 0
  %215 = vmatmul.mubr.bf16.gmra.mrb[0].mxu0 %v124
  %v216 = vpop.f32.mrb[0].mxu0
  %v217 = vadd.f32 0.0, %v216
  %v218 = vpop.f32.mrb[0].mxu0
  %v219 = vpop.f32.mrb[0].mxu0
  %v220 = vadd.f32 0.0, %v219
  %v221 = vpop.f32.mrb[0].mxu0
  %222 = vdwg.mxu0
  %v223 = vld [vmem:[%s2] sm:$0x1]
  %v225 = vlaneseq
  %v226 = vshrl.u32 %v225, 7
  %v227 = vsub.s32 0, %v226
  %v228 = vrot.slane %v223, %v227
  %v230 = vmul.f32 %v161, %v228
  %v231 = vmul.f32 %v164, %v228
  %v232 = vmul.f32 %v169, %v228
  %v233 = vmul.f32 %v172, %v228
  %v234 = vmul.f32 %v177, %v228
  %v235 = vmul.f32 %v180, %v228
  %v236 = vmul.f32 %v185, %v228
  %v237 = vmul.f32 %v188, %v228
  %v238 = vmul.f32 %v193, %v228
  %v239 = vmul.f32 %v196, %v228
  %v240 = vmul.f32 %v201, %v228
  %v241 = vmul.f32 %v204, %v228
  %v242 = vmul.f32 %v209, %v228
  %v243 = vmul.f32 %v212, %v228
  %v244 = vmul.f32 %v217, %v228
  %v245 = vmul.f32 %v220, %v228
  %v246 = vld [vmem:[%s3] sm:$0x1]
  %v248 = vlaneseq
  %v249 = vshrl.u32 %v248, 7
  %v250 = vsub.s32 0, %v249
  %v251 = vrot.slane %v246, %v250
  %v253 = vadd.f32 %v230, %v251
  %v254 = vadd.f32 %v231, %v251
  %v255 = vadd.f32 %v232, %v251
  %v256 = vadd.f32 %v233, %v251
  %v257 = vadd.f32 %v234, %v251
  %v258 = vadd.f32 %v235, %v251
  %v259 = vadd.f32 %v236, %v251
  %v260 = vadd.f32 %v237, %v251
  %v261 = vadd.f32 %v238, %v251
  %v262 = vadd.f32 %v239, %v251
  %v263 = vadd.f32 %v240, %v251
  %v264 = vadd.f32 %v241, %v251
  %v265 = vadd.f32 %v242, %v251
  %v266 = vadd.f32 %v243, %v251
  %v267 = vadd.f32 %v244, %v251
  %v268 = vadd.f32 %v245, %v251
  %v269 = vmax.f32 %v253, 0.0
  %v270 = vmax.f32 %v254, 0.0
  %v271 = vmax.f32 %v255, 0.0
  %v272 = vmax.f32 %v256, 0.0
  %v273 = vmax.f32 %v257, 0.0
  %v274 = vmax.f32 %v258, 0.0
  %v275 = vmax.f32 %v259, 0.0
  %v276 = vmax.f32 %v260, 0.0
  %v277 = vmax.f32 %v261, 0.0
  %v278 = vmax.f32 %v262, 0.0
  %v279 = vmax.f32 %v263, 0.0
  %v280 = vmax.f32 %v264, 0.0
  %v281 = vmax.f32 %v265, 0.0
  %v282 = vmax.f32 %v266, 0.0
  %v283 = vmax.f32 %v267, 0.0
  %v284 = vmax.f32 %v268, 0.0
  %v285 = vpack.c.bf16 %v270, %v269
  %v286 = vpack.c.bf16 %v272, %v271
  %v287 = vpack.c.bf16 %v274, %v273
  %v288 = vpack.c.bf16 %v276, %v275
  %v289 = vpack.c.bf16 %v278, %v277
  %v290 = vpack.c.bf16 %v280, %v279
  %v291 = vpack.c.bf16 %v282, %v281
  %v292 = vpack.c.bf16 %v284, %v283
  %v301 = vunpack.c.l.b16 %v285
  %v302 = vunpack.c.h.b16 %v285
  %v303 = vunpack.c.l.b16 %v286
  %v304 = vunpack.c.h.b16 %v286
  %v305 = vunpack.c.l.b16 %v287
  %v306 = vunpack.c.h.b16 %v287
  %v307 = vunpack.c.l.b16 %v288
  %v308 = vunpack.c.h.b16 %v288
  %v309 = vunpack.c.l.b16 %v289
  %v310 = vunpack.c.h.b16 %v289
  %v311 = vunpack.c.l.b16 %v290
  %v312 = vunpack.c.h.b16 %v290
  %v313 = vunpack.c.l.b16 %v291
  %v314 = vunpack.c.h.b16 %v291
  %v315 = vunpack.c.l.b16 %v292
  %v316 = vunpack.c.h.b16 %v292
  %v317 = vpack.c.b16 %v301, %v301
  %v318 = vpack.c.b16 %v302, %v302
  %v319 = vpack.c.b16 %v303, %v303
  %v320 = vpack.c.b16 %v304, %v304
  %v321 = vpack.c.b16 %v305, %v305
  %v322 = vpack.c.b16 %v306, %v306
  %v323 = vpack.c.b16 %v307, %v307
  %v324 = vpack.c.b16 %v308, %v308
  %v325 = vpack.c.b16 %v309, %v309
  %v326 = vpack.c.b16 %v310, %v310
  %v327 = vpack.c.b16 %v311, %v311
  %v328 = vpack.c.b16 %v312, %v312
  %v329 = vpack.c.b16 %v313, %v313
  %v330 = vpack.c.b16 %v314, %v314
  %v331 = vpack.c.b16 %v315, %v315
  %v332 = vpack.c.b16 %v316, %v316
  %vm349 = vcmask 125952
  %350 = vst.msk [vmem:[%s7] sm:$0xf] %vm349, %v317
  %351 = vst.msk [vmem:[%s7 + $0x4] sm:$0xf] %vm349, %v318
  %352 = vst.msk [vmem:[%s7 + $0x8] sm:$0xf] %vm349, %v319
  %353 = vst.msk [vmem:[%s7 + $0xc] sm:$0xf] %vm349, %v320
  %354 = vst.msk [vmem:[%s7 + $0x10] sm:$0xf] %vm349, %v321
  %355 = vst.msk [vmem:[%s7 + $0x14] sm:$0xf] %vm349, %v322
  %356 = vst.msk [vmem:[%s7 + $0x18] sm:$0xf] %vm349, %v323
  %357 = vst.msk [vmem:[%s7 + $0x1c] sm:$0xf] %vm349, %v324
  %358 = vst.msk [vmem:[%s7 + $0x20] sm:$0xf] %vm349, %v325
  %359 = vst.msk [vmem:[%s7 + $0x24] sm:$0xf] %vm349, %v326
  %360 = vst.msk [vmem:[%s7 + $0x28] sm:$0xf] %vm349, %v327
  %361 = vst.msk [vmem:[%s7 + $0x2c] sm:$0xf] %vm349, %v328
  %362 = vst.msk [vmem:[%s7 + $0x30] sm:$0xf] %vm349, %v329
  %363 = vst.msk [vmem:[%s7 + $0x34] sm:$0xf] %vm349, %v330
  %364 = vst.msk [vmem:[%s7 + $0x38] sm:$0xf] %vm349, %v331
  %365 = vst.msk [vmem:[%s7 + $0x3c] sm:$0xf] %vm349, %v332
  %v366 = vld [vmem:[%s4] sm:$0xf]
  %v367 = vld [vmem:[%s4 + $0x4] sm:$0xf]
  %v370 = vunpack.c.l.b16 %v366
  %v371 = vunpack.c.l.b16 %v367
  %v372 = vpack.c.b16 %v371, %v370
  %vm374 = vcmask 130048
  %v376 = vsel %vm374, %v285, 0
  %v379 = vsel %vm374, %v286, 0
  %v382 = vsel %vm374, %v287, 0
  %v385 = vsel %vm374, %v288, 0
  %v388 = vsel %vm374, %v289, 0
  %v391 = vsel %vm374, %v290, 0
  %v394 = vsel %vm374, %v291, 0
  %v397 = vsel %vm374, %v292, 0
  %399 = vmatprep.subr.bf16.mxu0 0
  %400 = vmatpush1.bf16.msra.mxu0 %v372
  %401 = vmatprep.subr.bf16.mxu0 0
  %402 = vmatpush1.bf16.msra.mxu0 0
  %403 = vmatprep.subr.bf16.mxu0 0
  %404 = vmatpush1.bf16.msra.mxu0 0
  %405 = vmatprep.subr.bf16.mxu0 0
  %406 = vmatpush1.bf16.msra.mxu0 0
  %407 = vmatprep.subr.bf16.mxu0 0
  %408 = vmatpush1.bf16.msra.mxu0 0
  %409 = vmatprep.subr.bf16.mxu0 0
  %410 = vmatpush1.bf16.msra.mxu0 0
  %411 = vmatprep.subr.bf16.mxu0 0
  %412 = vmatpush1.bf16.msra.mxu0 0
  %413 = vmatprep.subr.bf16.mxu0 0
  %414 = vmatpush1.bf16.msra.mxu0 0
  %415 = vmatprep.subr.bf16.mxu0 0
  %416 = vmatpush1.bf16.msra.mxu0 0
  %417 = vmatprep.subr.bf16.mxu0 0
  %418 = vmatpush1.bf16.msra.mxu0 0
  %419 = vmatprep.subr.bf16.mxu0 0
  %420 = vmatpush1.bf16.msra.mxu0 0
  %421 = vmatprep.subr.bf16.mxu0 0
  %422 = vmatpush1.bf16.msra.mxu0 0
  %423 = vmatprep.subr.bf16.mxu0 0
  %424 = vmatpush1.bf16.msra.mxu0 0
  %425 = vmatprep.subr.bf16.mxu0 0
  %426 = vmatpush1.bf16.msra.mxu0 0
  %427 = vmatprep.subr.bf16.mxu0 0
  %428 = vmatpush1.bf16.msra.mxu0 0
  %429 = vmatprep.subr.bf16.mxu0 0
  %430 = vmatpush1.bf16.msra.mxu0 0
  %431 = vmatprep.mubr.bf16.mxu0 0
  %432 = vmatmul.mubr.bf16.gmra.mrb[0].mxu0 %v376
  %v433 = vpop.f32.mrb[0].mxu0
  %v434 = vadd.f32 0.0, %v433
  %v435 = vpop.f32.mrb[0].mxu0
  %v436 = vpop.f32.mrb[0].mxu0
  %v437 = vadd.f32 0.0, %v436
  %v438 = vpop.f32.mrb[0].mxu0
  %439 = vmatprep.mubr.bf16.mxu0 0
  %440 = vmatmul.mubr.bf16.gmra.mrb[0].mxu0 %v379
  %v441 = vpop.f32.mrb[0].mxu0
  %v442 = vadd.f32 0.0, %v441
  %v443 = vpop.f32.mrb[0].mxu0
  %v444 = vpop.f32.mrb[0].mxu0
  %v445 = vadd.f32 0.0, %v444
  %v446 = vpop.f32.mrb[0].mxu0
  %447 = vmatprep.mubr.bf16.mxu0 0
  %448 = vmatmul.mubr.bf16.gmra.mrb[0].mxu0 %v382
  %v449 = vpop.f32.mrb[0].mxu0
  %v450 = vadd.f32 0.0, %v449
  %v451 = vpop.f32.mrb[0].mxu0
  %v452 = vpop.f32.mrb[0].mxu0
  %v453 = vadd.f32 0.0, %v452
  %v454 = vpop.f32.mrb[0].mxu0
  %455 = vmatprep.mubr.bf16.mxu0 0
  %456 = vmatmul.mubr.bf16.gmra.mrb[0].mxu0 %v385
  %v457 = vpop.f32.mrb[0].mxu0
  %v458 = vadd.f32 0.0, %v457
  %v459 = vpop.f32.mrb[0].mxu0
  %v460 = vpop.f32.mrb[0].mxu0
  %v461 = vadd.f32 0.0, %v460
  %v462 = vpop.f32.mrb[0].mxu0
  %463 = vmatprep.mubr.bf16.mxu0 0
  %464 = vmatmul.mubr.bf16.gmra.mrb[0].mxu0 %v388
  %v465 = vpop.f32.mrb[0].mxu0
  %v466 = vadd.f32 0.0, %v465
  %v467 = vpop.f32.mrb[0].mxu0
  %v468 = vpop.f32.mrb[0].mxu0
  %v469 = vadd.f32 0.0, %v468
  %v470 = vpop.f32.mrb[0].mxu0
  %471 = vmatprep.mubr.bf16.mxu0 0
  %472 = vmatmul.mubr.bf16.gmra.mrb[0].mxu0 %v391
  %v473 = vpop.f32.mrb[0].mxu0
  %v474 = vadd.f32 0.0, %v473
  %v475 = vpop.f32.mrb[0].mxu0
  %v476 = vpop.f32.mrb[0].mxu0
  %v477 = vadd.f32 0.0, %v476
  %v478 = vpop.f32.mrb[0].mxu0
  %479 = vmatprep.mubr.bf16.mxu0 0
  %480 = vmatmul.mubr.bf16.gmra.mrb[0].mxu0 %v394
  %v481 = vpop.f32.mrb[0].mxu0
  %v482 = vadd.f32 0.0, %v481
  %v483 = vpop.f32.mrb[0].mxu0
  %v484 = vpop.f32.mrb[0].mxu0
  %v485 = vadd.f32 0.0, %v484
  %v486 = vpop.f32.mrb[0].mxu0
  %487 = vmatprep.mubr.bf16.mxu0 0
  %488 = vmatmul.mubr.bf16.gmra.mrb[0].mxu0 %v397
  %v489 = vpop.f32.mrb[0].mxu0
  %v490 = vadd.f32 0.0, %v489
  %v491 = vpop.f32.mrb[0].mxu0
  %v492 = vpop.f32.mrb[0].mxu0
  %v493 = vadd.f32 0.0, %v492
  %v494 = vpop.f32.mrb[0].mxu0
  %495 = vdwg.mxu0
  %v496 = vld [vmem:[%s5] sm:$0x1]
  %v498 = vlaneseq
  %v499 = vshrl.u32 %v498, 7
  %v500 = vsub.s32 0, %v499
  %v501 = vrot.slane %v496, %v500
  %v503 = vmul.f32 %v434, %v501
  %v504 = vmul.f32 %v437, %v501
  %v505 = vmul.f32 %v442, %v501
  %v506 = vmul.f32 %v445, %v501
  %v507 = vmul.f32 %v450, %v501
  %v508 = vmul.f32 %v453, %v501
  %v509 = vmul.f32 %v458, %v501
  %v510 = vmul.f32 %v461, %v501
  %v511 = vmul.f32 %v466, %v501
  %v512 = vmul.f32 %v469, %v501
  %v513 = vmul.f32 %v474, %v501
  %v514 = vmul.f32 %v477, %v501
  %v515 = vmul.f32 %v482, %v501
  %v516 = vmul.f32 %v485, %v501
  %v517 = vmul.f32 %v490, %v501
  %v518 = vmul.f32 %v493, %v501
  %v519 = vld [vmem:[%s6] sm:$0x1]
  %v521 = vlaneseq
  %v522 = vshrl.u32 %v521, 7
  %v523 = vsub.s32 0, %v522
  %v524 = vrot.slane %v519, %v523
  %v526 = vadd.f32 %v503, %v524
  %v527 = vadd.f32 %v504, %v524
  %v528 = vadd.f32 %v505, %v524
  %v529 = vadd.f32 %v506, %v524
  %v530 = vadd.f32 %v507, %v524
  %v531 = vadd.f32 %v508, %v524
  %v532 = vadd.f32 %v509, %v524
  %v533 = vadd.f32 %v510, %v524
  %v534 = vadd.f32 %v511, %v524
  %v535 = vadd.f32 %v512, %v524
  %v536 = vadd.f32 %v513, %v524
  %v537 = vadd.f32 %v514, %v524
  %v538 = vadd.f32 %v515, %v524
  %v539 = vadd.f32 %v516, %v524
  %v540 = vadd.f32 %v517, %v524
  %v541 = vadd.f32 %v518, %v524
  %v542 = vmax.f32 %v526, 0.0
  %v543 = vmax.f32 %v527, 0.0
  %v544 = vmax.f32 %v528, 0.0
  %v545 = vmax.f32 %v529, 0.0
  %v546 = vmax.f32 %v530, 0.0
  %v547 = vmax.f32 %v531, 0.0
  %v548 = vmax.f32 %v532, 0.0
  %v549 = vmax.f32 %v533, 0.0
  %v550 = vmax.f32 %v534, 0.0
  %v551 = vmax.f32 %v535, 0.0
  %v552 = vmax.f32 %v536, 0.0
  %v553 = vmax.f32 %v537, 0.0
  %v554 = vmax.f32 %v538, 0.0
  %v555 = vmax.f32 %v539, 0.0
  %v556 = vmax.f32 %v540, 0.0
  %v557 = vmax.f32 %v541, 0.0
  %v558 = vpack.c.bf16 %v543, %v542
  %v559 = vpack.c.bf16 %v545, %v544
  %v560 = vpack.c.bf16 %v547, %v546
  %v561 = vpack.c.bf16 %v549, %v548
  %v562 = vpack.c.bf16 %v551, %v550
  %v563 = vpack.c.bf16 %v553, %v552
  %v564 = vpack.c.bf16 %v555, %v554
  %v565 = vpack.c.bf16 %v557, %v556
  %v574 = vunpack.c.l.b16 %v558
  %v575 = vunpack.c.h.b16 %v558
  %v576 = vunpack.c.l.b16 %v559
  %v577 = vunpack.c.h.b16 %v559
  %v578 = vunpack.c.l.b16 %v560
  %v579 = vunpack.c.h.b16 %v560
  %v580 = vunpack.c.l.b16 %v561
  %v581 = vunpack.c.h.b16 %v561
  %v582 = vunpack.c.l.b16 %v562
  %v583 = vunpack.c.h.b16 %v562
  %v584 = vunpack.c.l.b16 %v563
  %v585 = vunpack.c.h.b16 %v563
  %v586 = vunpack.c.l.b16 %v564
  %v587 = vunpack.c.h.b16 %v564
  %v588 = vunpack.c.l.b16 %v565
  %v589 = vunpack.c.h.b16 %v565
  %v590 = vpack.c.b16 %v574, %v574
  %v591 = vpack.c.b16 %v575, %v575
  %v592 = vpack.c.b16 %v576, %v576
  %v593 = vpack.c.b16 %v577, %v577
  %v594 = vpack.c.b16 %v578, %v578
  %v595 = vpack.c.b16 %v579, %v579
  %v596 = vpack.c.b16 %v580, %v580
  %v597 = vpack.c.b16 %v581, %v581
  %v598 = vpack.c.b16 %v582, %v582
  %v599 = vpack.c.b16 %v583, %v583
  %v600 = vpack.c.b16 %v584, %v584
  %v601 = vpack.c.b16 %v585, %v585
  %v602 = vpack.c.b16 %v586, %v586
  %v603 = vpack.c.b16 %v587, %v587
  %v604 = vpack.c.b16 %v588, %v588
  %v605 = vpack.c.b16 %v589, %v589
  %vm622 = vcmask 60416
  %623 = vst.msk [vmem:[%s8] sm:$0xf] %vm622, %v590
  %624 = vst.msk [vmem:[%s8 + $0x4] sm:$0xf] %vm622, %v591
  %625 = vst.msk [vmem:[%s8 + $0x8] sm:$0xf] %vm622, %v592
  %626 = vst.msk [vmem:[%s8 + $0xc] sm:$0xf] %vm622, %v593
  %627 = vst.msk [vmem:[%s8 + $0x10] sm:$0xf] %vm622, %v594
  %628 = vst.msk [vmem:[%s8 + $0x14] sm:$0xf] %vm622, %v595
  %629 = vst.msk [vmem:[%s8 + $0x18] sm:$0xf] %vm622, %v596
  %630 = vst.msk [vmem:[%s8 + $0x1c] sm:$0xf] %vm622, %v597
  %631 = vst.msk [vmem:[%s8 + $0x20] sm:$0xf] %vm622, %v598
  %632 = vst.msk [vmem:[%s8 + $0x24] sm:$0xf] %vm622, %v599
  %633 = vst.msk [vmem:[%s8 + $0x28] sm:$0xf] %vm622, %v600
  %634 = vst.msk [vmem:[%s8 + $0x2c] sm:$0xf] %vm622, %v601
  %635 = vst.msk [vmem:[%s8 + $0x30] sm:$0xf] %vm622, %v602
  %636 = vst.msk [vmem:[%s8 + $0x34] sm:$0xf] %vm622, %v603
  %637 = vst.msk [vmem:[%s8 + $0x38] sm:$0xf] %vm622, %v604
  %638 = vst.msk [vmem:[%s8 + $0x3c] sm:$0xf] %vm622, %v605
  // Predicated region
  $region30: #{stem_block_forward.3} parent=0 // pred_check
    _
  $region31: #{stem_block_forward.3} parent=0 // pred_check_branch
    %640 = sbr.rel (0) target = $region33
  $region32: #{stem_block_forward.3} parent=0 // pred_region
    _
  $region33: #{stem_block_forward.3} parent=0 // pred_fallthru
    _
  // Predicated region
  $region34: #{stem_block_forward.3} parent=0 // pred_check
    _
  $region35: #{stem_block_forward.3} parent=0 // pred_check_branch
    %642 = sbr.rel (0) target = $region37
  $region36: #{stem_block_forward.3} parent=0 // pred_region
    _
  $region37: #{stem_block_forward.3} parent=0 // pred_fallthru
    _
  // Predicated region
  $region38: #{stem_block_forward.3} parent=0 // pred_check
    _
  $region39: #{stem_block_forward.3} parent=0 // pred_check_branch
    %644 = sbr.rel (0) target = $region41
  $region40: #{stem_block_forward.3} parent=0 // pred_region
    _
  $region41: #{stem_block_forward.3} parent=0 // pred_fallthru
    _
  // Predicated region
  $region42: #{stem_block_forward.3} parent=0 // pred_check
    _
  $region43: #{stem_block_forward.3} parent=0 // pred_check_branch
    %646 = sbr.rel (0) target = $region45
  $region44: #{stem_block_forward.3} parent=0 // pred_region
    _
  $region45: #{stem_block_forward.3} parent=0 // pred_fallthru
    _

// kernel: stem_block_forward.5
$region0: #{stem_block_forward.5}
  #allocation0 [shape = 'u32[]', space=smem, size = 0x4, offset = 0x4, fixed_abs, tag = 'smem constant byte address 0x4 - core index']
  #allocation1 [shape = 'u32[144,128]{1,0:T(1,128)}', space=vmem, size = 0x12000, scoped, tag = 'internal scratch']
  %s0 = inlined_call_operand.vmem [shape: bf16[32,288], index: 0, kind: input, shape index: {}]
  %s1 = inlined_call_operand.vmem [shape: bf16[288,16], index: 1, kind: input, shape index: {}]
  %s2 = inlined_call_operand.vmem [shape: f32[1,16], index: 2, kind: input, shape index: {}]
  %s3 = inlined_call_operand.vmem [shape: f32[1,16], index: 3, kind: input, shape index: {}]
  %s4 = inlined_call_operand.hbm [shape: f32[32,16], index: 4, kind: output, shape index: {}]
  %s5 = sld [smem:[#allocation0]]
  $region26: #{stem_block_forward.5} parent=0
    _
  %s7 = ssub.s32 1, %s5
  %s8 = scalar_select 0, %s7, %s5
  $region1: #{stem_block_forward.5} parent=0
    #allocation2 [shape = 'u8[16384]{0}', space=vmem, size = 0x4000, scoped, tag = 'output window, operand 0, single buffered']
    #allocation3 [shape = 's32[1]{0}', space=sflag, size = 0x4, scoped, tag = 'scoped memory for stem_block_forward.5']
    %9 = vsyncpa [#allocation3], 0
    // Predicated region
    $region2: #{stem_block_forward.5} parent=1 // pred_check
      _
    $region3: #{stem_block_forward.5} parent=1 // pred_check_branch
      %11 = sbr.rel (0) target = $region5
    $region4: #{stem_block_forward.5} parent=1 // pred_region
      _
    $region5: #{stem_block_forward.5} parent=1 // pred_fallthru
      _
    // Predicated region
    $region6: #{stem_block_forward.5} parent=1 // pred_check
      _
    $region7: #{stem_block_forward.5} parent=1 // pred_check_branch
      %13 = sbr.rel (0) target = $region9
    $region8: #{stem_block_forward.5} parent=1 // pred_region
      _
    $region9: #{stem_block_forward.5} parent=1 // pred_fallthru
      _
    // Predicated region
    $region10: #{stem_block_forward.5} parent=1 // pred_check
      _
    $region11: #{stem_block_forward.5} parent=1 // pred_check_branch
      %15 = sbr.rel (0) target = $region13
    $region12: #{stem_block_forward.5} parent=1 // pred_region
      _
    $region13: #{stem_block_forward.5} parent=1 // pred_fallthru
      _
    // Predicated region
    $region14: #{stem_block_forward.5} parent=1 // pred_check
      _
    $region15: #{stem_block_forward.5} parent=1 // pred_check_branch
      %17 = sbr.rel (0) target = $region17
    $region16: #{stem_block_forward.5} parent=1 // pred_region
      _
    $region17: #{stem_block_forward.5} parent=1 // pred_fallthru
      _
    %v19 = vld [vmem:[%s0] sm:$0xff]
    %v20 = vld [vmem:[%s0 + $0x8] sm:$0xf]
    %v21 = vld [vmem:[%s0 + $0xc] sm:$0xff]
    %v22 = vld [vmem:[%s0 + $0x14] sm:$0xf]
    %v23 = vld [vmem:[%s0 + $0x18] sm:$0xff]
    %v24 = vld [vmem:[%s0 + $0x20] sm:$0xf]
    %v25 = vld [vmem:[%s0 + $0x24] sm:$0xff]
    %v26 = vld [vmem:[%s0 + $0x2c] sm:$0xf]
    %v27 = vld [vmem:[%s1] sm:$0xf]
    %v28 = vld [vmem:[%s1 + $0x4] sm:$0xf]
    %v29 = vld [vmem:[%s1 + $0x8] sm:$0xf]
    %v30 = vld [vmem:[%s1 + $0xc] sm:$0xf]
    %v31 = vld [vmem:[%s1 + $0x10] sm:$0xf]
    %v32 = vld [vmem:[%s1 + $0x14] sm:$0xf]
    %v33 = vld [vmem:[%s1 + $0x18] sm:$0xf]
    %v34 = vld [vmem:[%s1 + $0x1c] sm:$0xf]
    %v35 = vld [vmem:[%s1 + $0x20] sm:$0xf]
    %v36 = vld [vmem:[%s1 + $0x24] sm:$0xf]
    %v37 = vld [vmem:[%s1 + $0x28] sm:$0xf]
    %v38 = vld [vmem:[%s1 + $0x2c] sm:$0xf]
    %v39 = vld [vmem:[%s1 + $0x30] sm:$0xf]
    %v40 = vld [vmem:[%s1 + $0x34] sm:$0xf]
    %v41 = vld [vmem:[%s1 + $0x38] sm:$0xf]
    %v42 = vld [vmem:[%s1 + $0x3c] sm:$0xf]
    %v43 = vld [vmem:[%s1 + $0x40] sm:$0xf]
    %v44 = vld [vmem:[%s1 + $0x44] sm:$0xf]
    %v45 = vld [vmem:[%s1 + $0x48] sm:$0xf]
    %v46 = vld [vmem:[%s1 + $0x4c] sm:$0xf]
    %v47 = vld [vmem:[%s1 + $0x50] sm:$0xf]
    %v48 = vld [vmem:[%s1 + $0x54] sm:$0xf]
    %v49 = vld [vmem:[%s1 + $0x58] sm:$0xf]
    %v50 = vld [vmem:[%s1 + $0x5c] sm:$0xf]
    %v51 = vld [vmem:[%s1 + $0x60] sm:$0xf]
    %v52 = vld [vmem:[%s1 + $0x64] sm:$0xf]
    %v53 = vld [vmem:[%s1 + $0x68] sm:$0xf]
    %v54 = vld [vmem:[%s1 + $0x6c] sm:$0xf]
    %v55 = vld [vmem:[%s1 + $0x70] sm:$0xf]
    %v56 = vld [vmem:[%s1 + $0x74] sm:$0xf]
    %v57 = vld [vmem:[%s1 + $0x78] sm:$0xf]
    %v58 = vld [vmem:[%s1 + $0x7c] sm:$0xf]
    %v59 = vld [vmem:[%s1 + $0x80] sm:$0xf]
    %v60 = vld [vmem:[%s1 + $0x84] sm:$0xf]
    %v61 = vld [vmem:[%s1 + $0x88] sm:$0xf]
    %v62 = vld [vmem:[%s1 + $0x8c] sm:$0xf]
    %v71 = vunpack.c.l.b16 %v19
    %v72 = vunpack.c.h.b16 %v19
    %v73 = vunpack.c.l.b16 %v20
    %v74 = vunpack.c.l.b16 %v21
    %v75 = vunpack.c.h.b16 %v21
    %v76 = vunpack.c.l.b16 %v22
    %v77 = vunpack.c.l.b16 %v23
    %v78 = vunpack.c.h.b16 %v23
    %v79 = vunpack.c.l.b16 %v24
    %v80 = vunpack.c.l.b16 %v25
    %v81 = vunpack.c.h.b16 %v25
    %v82 = vunpack.c.l.b16 %v26
    %v83 = vpack.c.b16 %v74, %v71
    %v84 = vpack.c.b16 %v75, %v72
    %v85 = vpack.c.b16 %v76, %v73
    %v86 = vpack.c.b16 %v80, %v77
    %v87 = vpack.c.b16 %v81, %v78
    %v88 = vpack.c.b16 %v82, %v79
    %v129 = vunpack.c.l.b16 %v27
    %v130 = vunpack.c.l.b16 %v28
    %v131 = vunpack.c.l.b16 %v29
    %v132 = vunpack.c.l.b16 %v30
    %v133 = vunpack.c.l.b16 %v31
    %v134 = vunpack.c.l.b16 %v32
    %v135 = vunpack.c.l.b16 %v33
    %v136 = vunpack.c.l.b16 %v34
    %v137 = vunpack.c.l.b16 %v35
    %v138 = vunpack.c.l.b16 %v36
    %v139 = vunpack.c.l.b16 %v37
    %v140 = vunpack.c.l.b16 %v38
    %v141 = vunpack.c.l.b16 %v39
    %v142 = vunpack.c.l.b16 %v40
    %v143 = vunpack.c.l.b16 %v41
    %v144 = vunpack.c.l.b16 %v42
    %v145 = vunpack.c.l.b16 %v43
    %v146 = vunpack.c.l.b16 %v44
    %v147 = vunpack.c.l.b16 %v45
    %v148 = vunpack.c.l.b16 %v46
    %v149 = vunpack.c.l.b16 %v47
    %v150 = vunpack.c.l.b16 %v48
    %v151 = vunpack.c.l.b16 %v49
    %v152 = vunpack.c.l.b16 %v50
    %v153 = vunpack.c.l.b16 %v51
    %v154 = vunpack.c.l.b16 %v52
    %v155 = vunpack.c.l.b16 %v53
    %v156 = vunpack.c.l.b16 %v54
    %v157 = vunpack.c.l.b16 %v55
    %v158 = vunpack.c.l.b16 %v56
    %v159 = vunpack.c.l.b16 %v57
    %v160 = vunpack.c.l.b16 %v58
    %v161 = vunpack.c.l.b16 %v59
    %v162 = vunpack.c.l.b16 %v60
    %v163 = vunpack.c.l.b16 %v61
    %v164 = vunpack.c.l.b16 %v62
    %v165 = vpack.c.b16 %v130, %v129
    %v166 = vpack.c.b16 %v132, %v131
    %v167 = vpack.c.b16 %v134, %v133
    %v168 = vpack.c.b16 %v136, %v135
    %v169 = vpack.c.b16 %v138, %v137
    %v170 = vpack.c.b16 %v140, %v139
    %v171 = vpack.c.b16 %v142, %v141
    %v172 = vpack.c.b16 %v144, %v143
    %v173 = vpack.c.b16 %v146, %v145
    %v174 = vpack.c.b16 %v148, %v147
    %v175 = vpack.c.b16 %v150, %v149
    %v176 = vpack.c.b16 %v152, %v151
    %v177 = vpack.c.b16 %v154, %v153
    %v178 = vpack.c.b16 %v156, %v155
    %v179 = vpack.c.b16 %v158, %v157
    %v180 = vpack.c.b16 %v160, %v159
    %v181 = vpack.c.b16 %v162, %v161
    %v182 = vpack.c.b16 %v164, %v163
    %vm201 = vcmask 261120
    %v203 = vsel %vm201, %v85, 0
    %v206 = vsel %vm201, %v88, 0
    %208 = vmatprep.subr.bf16.mxu0 0
    %209 = vmatpush1.bf16.msra.mxu0 %v165
    %210 = vmatprep.subr.bf16.mxu0 0
    %211 = vmatpush1.bf16.msra.mxu0 %v166
    %212 = vmatprep.subr.bf16.mxu0 0
    %213 = vmatpush1.bf16.msra.mxu0 %v167
    %214 = vmatprep.subr.bf16.mxu0 0
    %215 = vmatpush1.bf16.msra.mxu0 %v168
    %216 = vmatprep.subr.bf16.mxu0 0
    %217 = vmatpush1.bf16.msra.mxu0 %v169
    %218 = vmatprep.subr.bf16.mxu0 0
    %219 = vmatpush1.bf16.msra.mxu0 %v170
    %220 = vmatprep.subr.bf16.mxu0 0
    %221 = vmatpush1.bf16.msra.mxu0 %v171
    %222 = vmatprep.subr.bf16.mxu0 0
    %223 = vmatpush1.bf16.msra.mxu0 %v172
    %224 = vmatprep.subr.bf16.mxu0 0
    %225 = vmatpush1.bf16.msra.mxu0 %v173
    %226 = vmatprep.subr.bf16.mxu0 0
    %227 = vmatpush1.bf16.msra.mxu0 %v174
    %228 = vmatprep.subr.bf16.mxu0 0
    %229 = vmatpush1.bf16.msra.mxu0 %v175
    %230 = vmatprep.subr.bf16.mxu0 0
    %231 = vmatpush1.bf16.msra.mxu0 %v176
    %232 = vmatprep.subr.bf16.mxu0 0
    %233 = vmatpush1.bf16.msra.mxu0 %v177
    %234 = vmatprep.subr.bf16.mxu0 0
    %235 = vmatpush1.bf16.msra.mxu0 %v178
    %236 = vmatprep.subr.bf16.mxu0 0
    %237 = vmatpush1.bf16.msra.mxu0 %v179
    %238 = vmatprep.subr.bf16.mxu0 0
    %239 = vmatpush1.bf16.msra.mxu0 %v180
    %240 = vmatprep.mubr.bf16.mxu0 %v84
    %241 = vmatmul.mubr.bf16.gmra.mrb[0].mxu0 %v83
    %v242 = vpop.f32.mrb[0].mxu0
    %v243 = vadd.f32 0.0, %v242
    %v244 = vpop.f32.mrb[0].mxu0
    %v245 = vpop.f32.mrb[0].mxu0
    %v246 = vadd.f32 0.0, %v245
    %v247 = vpop.f32.mrb[0].mxu0
    %248 = vmatprep.mubr.bf16.mxu0 %v87
    %249 = vmatmul.mubr.bf16.gmra.mrb[0].mxu0 %v86
    %v250 = vpop.f32.mrb[0].mxu0
    %v251 = vadd.f32 0.0, %v250
    %v252 = vpop.f32.mrb[0].mxu0
    %v253 = vpop.f32.mrb[0].mxu0
    %v254 = vadd.f32 0.0, %v253
    %v255 = vpop.f32.mrb[0].mxu0
    %256 = vdwg.mxu0
    %257 = vmatprep.subr.bf16.mxu0 0
    %258 = vmatpush1.bf16.msra.mxu0 %v181
    %259 = vmatprep.subr.bf16.mxu0 0
    %260 = vmatpush1.bf16.msra.mxu0 %v182
    %261 = vmatprep.subr.bf16.mxu0 0
    %262 = vmatpush1.bf16.msra.mxu0 0
    %263 = vmatprep.subr.bf16.mxu0 0
    %264 = vmatpush1.bf16.msra.mxu0 0
    %265 = vmatprep.subr.bf16.mxu0 0
    %266 = vmatpush1.bf16.msra.mxu0 0
    %267 = vmatprep.subr.bf16.mxu0 0
    %268 = vmatpush1.bf16.msra.mxu0 0
    %269 = vmatprep.subr.bf16.mxu0 0
    %270 = vmatpush1.bf16.msra.mxu0 0
    %271 = vmatprep.subr.bf16.mxu0 0
    %272 = vmatpush1.bf16.msra.mxu0 0
    %273 = vmatprep.subr.bf16.mxu0 0
    %274 = vmatpush1.bf16.msra.mxu0 0
    %275 = vmatprep.subr.bf16.mxu0 0
    %276 = vmatpush1.bf16.msra.mxu0 0
    %277 = vmatprep.subr.bf16.mxu0 0
    %278 = vmatpush1.bf16.msra.mxu0 0
    %279 = vmatprep.subr.bf16.mxu0 0
    %280 = vmatpush1.bf16.msra.mxu0 0
    %281 = vmatprep.subr.bf16.mxu0 0
    %282 = vmatpush1.bf16.msra.mxu0 0
    %283 = vmatprep.subr.bf16.mxu0 0
    %284 = vmatpush1.bf16.msra.mxu0 0
    %285 = vmatprep.subr.bf16.mxu0 0
    %286 = vmatpush1.bf16.msra.mxu0 0
    %287 = vmatprep.subr.bf16.mxu0 0
    %288 = vmatpush1.bf16.msra.mxu0 0
    %289 = vmatprep.mubr.bf16.mxu0 0
    %290 = vmatmul.mubr.bf16.gmra.mrb[0].mxu0 %v203
    %v291 = vpop.f32.mrb[0].mxu0
    %v292 = vadd.f32 %v243, %v291
    %v293 = vpop.f32.mrb[0].mxu0
    %v294 = vpop.f32.mrb[0].mxu0
    %v295 = vadd.f32 %v246, %v294
    %v296 = vpop.f32.mrb[0].mxu0
    %297 = vmatprep.mubr.bf16.mxu0 0
    %298 = vmatmul.mubr.bf16.gmra.mrb[0].mxu0 %v206
    %v299 = vpop.f32.mrb[0].mxu0
    %v300 = vadd.f32 %v251, %v299
    %v301 = vpop.f32.mrb[0].mxu0
    %v302 = vpop.f32.mrb[0].mxu0
    %v303 = vadd.f32 %v254, %v302
    %v304 = vpop.f32.mrb[0].mxu0
    %305 = vdwg.mxu0
    %v306 = vld [vmem:[%s2] sm:$0x1]
    %v308 = vlaneseq
    %v309 = vshrl.u32 %v308, 7
    %v310 = vsub.s32 0, %v309
    %v311 = vrot.slane %v306, %v310
    %v313 = vmul.f32 %v292, %v311
    %v314 = vmul.f32 %v295, %v311
    %v315 = vmul.f32 %v300, %v311
    %v316 = vmul.f32 %v303, %v311
    %v317 = vld [vmem:[%s3] sm:$0x1]
    %v319 = vlaneseq
    %v320 = vshrl.u32 %v319, 7
    %v321 = vsub.s32 0, %v320
    %v322 = vrot.slane %v317, %v321
    %v324 = vadd.f32 %v313, %v322
    %v325 = vadd.f32 %v314, %v322
    %v326 = vadd.f32 %v315, %v322
    %v327 = vadd.f32 %v316, %v322
    %v328 = vmax.f32 %v324, 0.0
    %v329 = vmax.f32 %v325, 0.0
    %v330 = vmax.f32 %v326, 0.0
    %v331 = vmax.f32 %v327, 0.0
    %vm332 = vcmask 130048
    %333 = vst.msk [vmem:[#allocation2] sm:$0xff] %vm332, %v328
    %334 = vst.msk [vmem:[#allocation2 + $0x8] sm:$0xff] %vm332, %v329
    %335 = vst.msk [vmem:[#allocation2 + $0x10] sm:$0xff] %vm332, %v330
    %336 = vst.msk [vmem:[#allocation2 + $0x18] sm:$0xff] %vm332, %v331
    // Predicated region
    $region18: #{stem_block_forward.5} parent=1 // pred_check
      _
    $region19: #{stem_block_forward.5} parent=1 // pred_check_branch
      %338 = sbr.rel (0) target = $region21
    $region20: #{stem_block_forward.5} parent=1 // pred_region
      %s340 = ssub.s32 512, 512
      %341 = vsyncadd [#allocation3], %s340
      %s342 = sshll.u32 [#allocation2], 4
      %s343 = int_to_ptr.vmem [resolvable:$true] %s342
      %348 = dma.vmem_to_hbm [thread:$0]  %s343, 512, %s4, [#allocation3], 128, 128, 8
    $region21: #{stem_block_forward.5} parent=1 // pred_fallthru
      _
    // Predicated region
    $region22: #{stem_block_forward.5} parent=1 // pred_check
      _
    $region23: #{stem_block_forward.5} parent=1 // pred_check_branch
      %350 = sbr.rel (0) target = $region25
    $region24: #{stem_block_forward.5} parent=1 // pred_region
      %351 = dma.done [#allocation3], 512
    $region25: #{stem_block_forward.5} parent=1 // pred_fallthru
      _
    %352 = vsyncpa [#allocation3], 1

</llo_original>
